<compile_context>
chip_gen: v6e
topology: v6e:2x2x1
jax: 0.10.0
libtpu: 0.0.40
codegen_flags: <defaults>
</compile_context>

<pallas_src>
import functools

import jax
import jax.numpy as jnp
from jax import lax
from jax.experimental import pallas as pl
from jax.experimental.pallas import tpu as pltpu

# ---------------------------------------------------------------------------
# Static packing layout (all offsets sublane/lane tile aligned for bf16/f32).
# ---------------------------------------------------------------------------
_H1, _H2 = 256, 128           # hidden widths (fixed by the PyTorch Model)
_F_PAD = 16                   # input features padded to the bf16 sublane packing (16)
_LABEL_COL = _F_PAD - 1       # float-encoded labels ride in the last x column
_C_PAD = 128                  # classes padded to a full lane tile (lane-dense logits)

# Single bf16 weight slab (one DMA instead of three):
#   rows [  0,  16) lanes [0,256): w1, zero-padded (13,256) -> (16,256)
#   rows [ 16, 272) lanes [0,128): w2 (256,128)
#   rows [272, 400) lanes [0,128): w3, zero-padded (128,3) -> (128,128)
_W1_R0, _W1_R1 = 0, _F_PAD
_W2_R0, _W2_R1 = _F_PAD, _F_PAD + _H1
_W3_R0, _W3_R1 = _F_PAD + _H1, _F_PAD + _H1 + _H2
_WPACK_ROWS, _WPACK_COLS = _W3_R1, 256

# Single f32 bias row (one DMA instead of three):
_B1_OFF, _B2_OFF, _B3_OFF, _BPACK_COLS = 0, _H1, _H1 + _H2, 512


# ---------------------------------------------------------------------------
# Kernel bodies
# ---------------------------------------------------------------------------
def _forward_logits(x2d, wpack_ref, bias_ref):
    """Linear->ReLU x3 (ReLU also after the last Linear, as in the PyTorch Model).

    x2d: (B, 16) f32 (label column multiplies zero weight rows -> contributes 0).
    Returns lane-dense (B, 128) f32 logits; lanes >= num_classes are padding.
    """
    w1 = wpack_ref[_W1_R0:_W1_R1, :]            # (16, 256)  bf16
    w2 = wpack_ref[_W2_R0:_W2_R1, 0:_H2]        # (256, 128) bf16
    w3 = wpack_ref[_W3_R0:_W3_R1, 0:_C_PAD]     # (128, 128) bf16

    b1 = bias_ref[:, _B1_OFF:_B1_OFF + _H1]     # (1, 256) f32
    b2 = bias_ref[:, _B2_OFF:_B2_OFF + _H2]     # (1, 128) f32
    b3 = bias_ref[:, _B3_OFF:_B3_OFF + _C_PAD]  # (1, 128) f32

    x = x2d.astype(jnp.bfloat16)
    h1 = jnp.maximum(
        jnp.dot(x, w1, preferred_element_type=jnp.float32) + b1, 0.0)
    h2 = jnp.maximum(
        jnp.dot(h1.astype(jnp.bfloat16), w2, preferred_element_type=jnp.float32) + b2, 0.0)
    logits = jnp.maximum(
        jnp.dot(h2.astype(jnp.bfloat16), w3, preferred_element_type=jnp.float32) + b3, 0.0)
    return logits                                # (B, 128) f32


def _softmax_ce(logits, lab_col, num_classes):
    """Numerically-stable softmax pieces + per-sample CE over the real classes only."""
    lane_i = lax.broadcasted_iota(jnp.int32, logits.shape, 1)       # (B, 128)
    lab_i = lab_col.astype(jnp.int32)                               # (B, 1)
    valid = lane_i < num_classes
    onehot = lane_i == lab_i

    z = jnp.where(valid, logits, jnp.float32(-1e30))                # mask padded lanes
    m = jnp.max(z, axis=1, keepdims=True)                           # (B, 1)
    e = jnp.exp(z - m)                                              # padded lanes -> 0
    s = jnp.sum(e, axis=1, keepdims=True)                           # (B, 1)
    lse = m + jnp.log(s)                                            # (B, 1)
    picked = jnp.sum(jnp.where(onehot, logits, 0.0), axis=1, keepdims=True)
    loss_per = lse - picked                                         # (B, 1)
    return e, s, loss_per


def _mlp_loss_kernel(x_ref, wpack_ref, bias_ref, loss_ref, *, num_classes):
    """Training path: scalar mean CE loss only (no predicts output)."""
    x2d = x_ref[...]                                                # (B, 16) f32
    logits = _forward_logits(x2d, wpack_ref, bias_ref)
    lab_col = x2d[:, _LABEL_COL:_LABEL_COL + 1]                     # (B, 1) float labels
    _, _, loss_per = _softmax_ce(logits, lab_col, num_classes)
    loss_ref[0, 0] = jnp.sum(loss_per) * (1.0 / float(logits.shape[0]))


def _mlp_eval_kernel(x_ref, wpack_ref, bias_ref, pred_ref, loss_ref, *, num_classes):
    """Eval path: lane-dense softmax predicts (VMEM) + scalar mean CE loss (SMEM)."""
    x2d = x_ref[...]
    logits = _forward_logits(x2d, wpack_ref, bias_ref)
    lab_col = x2d[:, _LABEL_COL:_LABEL_COL + 1]
    e, s, loss_per = _softmax_ce(logits, lab_col, num_classes)
    # Exact reciprocal (runs once on a (B,1) tensor): rows sum to 1; padded lanes are 0.
    pred_ref[...] = e * pl.reciprocal(s, approx=False)
    loss_ref[0, 0] = jnp.sum(loss_per) * (1.0 / float(logits.shape[0]))


def _mlp_batched_loss_kernel(x_ref, wpack_ref, bias_ref, loss_ref, *, num_classes):
    """Per-grid-step training loss: one mini-batch per step, weights stay resident."""
    x2d = x_ref[...]                                                # (B, 16) f32
    logits = _forward_logits(x2d, wpack_ref, bias_ref)
    lab_col = x2d[:, _LABEL_COL:_LABEL_COL + 1]
    _, _, loss_per = _softmax_ce(logits, lab_col, num_classes)
    # Lane-dense unmasked store; the wrapper reads lane 0.
    loss_ref[...] = jnp.broadcast_to(loss_per, loss_ref.shape)      # (B, 128)


# ---------------------------------------------------------------------------
# Host-side packing / wrappers
# ---------------------------------------------------------------------------
def _pack_inputs(x, labels):
    """Zero-pad features 13->16 and fold the float-encoded label into the last column."""
    b, f = x.shape
    assert f <= _LABEL_COL, "feature dim must leave the last padded column free"
    x_aug = jnp.zeros((b, _F_PAD), jnp.float32)
    x_aug = x_aug.at[:, :f].set(x.astype(jnp.float32))
    x_aug = x_aug.at[:, _LABEL_COL].set(labels.astype(jnp.float32))
    return x_aug


@functools.partial(jax.jit, static_argnames=("num_classes", "train_mode"))
def model_forward(x, labels, params, num_classes, train_mode=True):
    """Pallas-backed Model.forward for a single mini-batch (grid-less, fully resident)."""
    b = x.shape[0]
    x_aug = _pack_inputs(x, labels)

    vmem = pl.BlockSpec(memory_space=pltpu.MemorySpace.VMEM)
    smem = pl.BlockSpec(memory_space=pltpu.MemorySpace.SMEM)
    args = (x_aug, params["w_packed"], params["b_packed"])

    if train_mode:
        loss = pl.pallas_call(
            functools.partial(_mlp_loss_kernel, num_classes=num_classes),
            out_shape=jax.ShapeDtypeStruct((1, 1), jnp.float32),
            in_specs=[vmem, vmem, vmem],
            out_specs=smem,
        )(*args)
        return loss[0, 0]

    pred_pad, loss = pl.pallas_call(
        functools.partial(_mlp_eval_kernel, num_classes=num_classes),
        out_shape=(
            jax.ShapeDtypeStruct((b, _C_PAD), jnp.float32),  # lane-dense softmax slab
            jax.ShapeDtypeStruct((1, 1), jnp.float32),       # scalar CE loss
        ),
        in_specs=[vmem, vmem, vmem],
        out_specs=(vmem, smem),
    )(*args)
    return pred_pad[:, :num_classes], loss[0, 0]


@functools.partial(jax.jit, static_argnames=("num_classes",))
def model_forward_batched(x_stack, labels_stack, params, num_classes):
    """Training-loop path: grid over stacked mini-batches; weights/bias stay resident
    across grid steps (constant index_map); batch axis is "parallel" (2x on v7x)."""
    n, b, _ = x_stack.shape
    x_aug = jax.vmap(_pack_inputs)(x_stack, labels_stack)            # (N, B, 16)

    loss_slab = pl.pallas_call(
        functools.partial(_mlp_batched_loss_kernel, num_classes=num_classes),
        out_shape=jax.ShapeDtypeStruct((n, b, _C_PAD), jnp.float32),
        grid=(n,),
        in_specs=[
            pl.BlockSpec((None, b, _F_PAD), lambda i: (i, 0, 0)),
            pl.BlockSpec((_WPACK_ROWS, _WPACK_COLS), lambda i: (0, 0)),  # resident
            pl.BlockSpec((1, _BPACK_COLS), lambda i: (0, 0)),            # resident
        ],
        out_specs=pl.BlockSpec((None, b, _C_PAD), lambda i: (i, 0, 0)),
        compiler_params=pltpu.CompilerParams(dimension_semantics=("parallel",)),
    )(x_aug, params["w_packed"], params["b_packed"])

    return loss_slab[:, :, 0].mean(axis=1)                           # (N,) per-batch mean CE


def init_params(key, in_features, out_features):
    """nn.Linear-style U(-1/sqrt(fan_in), 1/sqrt(fan_in)) init, packed for the kernel."""
    assert in_features <= _LABEL_COL and out_features <= _C_PAD
    dims = [(in_features, _H1), (_H1, _H2), (_H2, out_features)]
    ws, bs = [], []
    for fan_in, fan_out in dims:
        key, kw, kb = jax.random.split(key, 3)
        bound = 1.0 / (float(fan_in) ** 0.5)
        ws.append(jax.random.uniform(kw, (fan_in, fan_out), jnp.float32, -bound, bound))
        bs.append(jax.random.uniform(kb, (fan_out,), jnp.float32, -bound, bound))

    wpack = jnp.zeros((_WPACK_ROWS, _WPACK_COLS), jnp.float32)
    wpack = wpack.at[_W1_R0:_W1_R0 + in_features, 0:_H1].set(ws[0])
    wpack = wpack.at[_W2_R0:_W2_R1, 0:_H2].set(ws[1])
    wpack = wpack.at[_W3_R0:_W3_R1, 0:out_features].set(ws[2])

    bpack = jnp.zeros((1, _BPACK_COLS), jnp.float32)
    bpack = bpack.at[0, _B1_OFF:_B1_OFF + _H1].set(bs[0])
    bpack = bpack.at[0, _B2_OFF:_B2_OFF + _H2].set(bs[1])
    bpack = bpack.at[0, _B3_OFF:_B3_OFF + out_features].set(bs[2])

    return {"w_packed": wpack.astype(jnp.bfloat16), "b_packed": bpack}


def _reference_forward(x, labels, params, num_classes):
    """Pure-JAX reference with the same bf16-at-the-MXU-boundary math."""
    wpack = params["w_packed"]
    w1 = wpack[_W1_R0:_W1_R1, 0:_H1]
    w2 = wpack[_W2_R0:_W2_R1, 0:_H2]
    w3 = wpack[_W3_R0:_W3_R1, 0:num_classes]
    brow = params["b_packed"][0]
    b1 = brow[_B1_OFF:_B1_OFF + _H1]
    b2 = brow[_B2_OFF:_B2_OFF + _H2]
    b3 = brow[_B3_OFF:_B3_OFF + num_classes]

    xp = jnp.zeros((x.shape[0], _F_PAD), jnp.float32).at[:, :x.shape[1]].set(x)
    h1 = jnp.maximum(jnp.dot(xp.astype(jnp.bfloat16), w1,
                             preferred_element_type=jnp.float32) + b1, 0.0)
    h2 = jnp.maximum(jnp.dot(h1.astype(jnp.bfloat16), w2,
                             preferred_element_type=jnp.float32) + b2, 0.0)
    logits = jnp.maximum(jnp.dot(h2.astype(jnp.bfloat16), w3,
                                 preferred_element_type=jnp.float32) + b3, 0.0)
    m = logits.max(axis=1, keepdims=True)
    e = jnp.exp(logits - m)
    predicts = e / e.sum(axis=1, keepdims=True)
    lse = m[:, 0] + jnp.log(e.sum(axis=1))
    loss = jnp.mean(lse - logits[jnp.arange(x.shape[0]), labels])
    return predicts, loss


# TODO(synk): only Model.forward is implemented; Dataset/DataLoader/optimizer from the
# original script are out of scope for the kernel.
if __name__ == "__main__":
    # Wine classification: 13 features, 3 classes; small mini-batches.
    B, IN_FEATURES, OUT_FEATURES = 8, 13, 3
    N_BATCHES = 4

    key = jax.random.PRNGKey(0)
    key, kx, kl, kp = jax.random.split(key, 4)

    x_stack = jax.random.normal(kx, (N_BATCHES, B, IN_FEATURES), dtype=jnp.float32)
    labels_stack = jax.random.randint(kl, (N_BATCHES, B), 0, OUT_FEATURES, dtype=jnp.int32)
    params = init_params(kp, IN_FEATURES, OUT_FEATURES)

    x0, lab0 = x_stack[0], labels_stack[0]

    # train_mode=True -> scalar loss (loss-only specialized, grid-less kernel)
    loss = model_forward(x0, lab0, params, OUT_FEATURES, train_mode=True)
    loss = jax.block_until_ready(loss)

    # train_mode=False -> (softmax predicts, loss)
    predicts, loss_eval = model_forward(x0, lab0, params, OUT_FEATURES, train_mode=False)
    jax.block_until_ready((predicts, loss_eval))

    # Training-loop path: grid over stacked mini-batches, weights resident across steps.
    losses = model_forward_batched(x_stack, labels_stack, params, OUT_FEATURES)
    losses = jax.block_until_ready(losses)

    # Sanity checks.
    ref_pred, ref_loss = _reference_forward(x0, lab0, params, OUT_FEATURES)
    assert predicts.shape == (B, OUT_FEATURES)
    assert losses.shape == (N_BATCHES,)
    assert bool(jnp.isfinite(loss)) and bool(jnp.isfinite(loss_eval))
    assert bool(jnp.all(jnp.isfinite(losses)))
    assert bool(jnp.allclose(jnp.sum(predicts, axis=1), 1.0, atol=1e-3))
    assert bool(jnp.allclose(loss, loss_eval, rtol=1e-5, atol=1e-5))
    assert bool(jnp.allclose(losses[0], loss, rtol=1e-4, atol=1e-4))
    assert bool(jnp.allclose(loss, ref_loss, rtol=2e-2, atol=2e-2))
    assert bool(jnp.allclose(predicts, ref_pred, rtol=2e-2, atol=2e-2))

    print("KERNEL_OK")
</pallas_src>

<mosaic_0001>
module attributes {stable_mosaic.version = 11 : i64} {
  func.func @_mlp_loss_kernel(%arg0: memref<8x16xf32, #tpu.memory_space<vmem>>, %arg1: memref<400x256xbf16, #tpu.memory_space<vmem>>, %arg2: memref<1x512xf32, #tpu.memory_space<vmem>>, %arg3: memref<1x1xf32, #tpu.memory_space<smem>>) attributes {dimension_semantics = [], scalar_prefetch = 0 : i64, scratch_operands = 0 : i64, tpu.core_type = #tpu.core_type<tc>} {
    %c0 = arith.constant 0 : index
    %c0_0 = arith.constant 0 : index
    %0 = vector.load %arg0[%c0, %c0_0] : memref<8x16xf32, #tpu.memory_space<vmem>>, vector<8x16xf32>
    %c0_1 = arith.constant 0 : index
    %c0_2 = arith.constant 0 : index
    %1 = vector.load %arg1[%c0_1, %c0_2] : memref<400x256xbf16, #tpu.memory_space<vmem>>, vector<16x256xbf16>
    %c16 = arith.constant 16 : index
    %c0_3 = arith.constant 0 : index
    %2 = vector.load %arg1[%c16, %c0_3] : memref<400x256xbf16, #tpu.memory_space<vmem>>, vector<256x128xbf16>
    %c272 = arith.constant 272 : index
    %c0_4 = arith.constant 0 : index
    %3 = vector.load %arg1[%c272, %c0_4] : memref<400x256xbf16, #tpu.memory_space<vmem>>, vector<128x128xbf16>
    %c0_5 = arith.constant 0 : index
    %c0_6 = arith.constant 0 : index
    %4 = vector.load %arg2[%c0_5, %c0_6] : memref<1x512xf32, #tpu.memory_space<vmem>>, vector<1x256xf32>
    %c0_7 = arith.constant 0 : index
    %c256 = arith.constant 256 : index
    %5 = vector.load %arg2[%c0_7, %c256] : memref<1x512xf32, #tpu.memory_space<vmem>>, vector<1x128xf32>
    %c0_8 = arith.constant 0 : index
    %c384 = arith.constant 384 : index
    %6 = vector.load %arg2[%c0_8, %c384] : memref<1x512xf32, #tpu.memory_space<vmem>>, vector<1x128xf32>
    %7 = arith.truncf %0 : vector<8x16xf32> to vector<8x16xbf16>
    %cst = arith.constant dense<0.000000e+00> : vector<8x256xf32>
    %8 = tpu.matmul %7, %1, %cst {dimension_numbers = #tpu.dot_dimension_numbers<[1], [0], [0], [1], [0, 0, 1, 1], [], []>} : vector<8x16xbf16>, vector<16x256xbf16>, vector<8x256xf32> -> vector<8x256xf32>
    %9 = vector.broadcast %4 : vector<1x256xf32> to vector<8x256xf32>
    %10 = arith.addf %8, %9 : vector<8x256xf32>
    %cst_9 = arith.constant 0.000000e+00 : f32
    %11 = vector.broadcast %cst_9 : f32 to vector<8x256xf32>
    %12 = arith.maximumf %10, %11 : vector<8x256xf32>
    %13 = arith.truncf %12 : vector<8x256xf32> to vector<8x256xbf16>
    %cst_10 = arith.constant dense<0.000000e+00> : vector<8x128xf32>
    %14 = tpu.matmul %13, %2, %cst_10 {dimension_numbers = #tpu.dot_dimension_numbers<[1], [0], [0], [1], [0, 0, 1, 1], [], []>} : vector<8x256xbf16>, vector<256x128xbf16>, vector<8x128xf32> -> vector<8x128xf32>
    %15 = vector.broadcast %5 : vector<1x128xf32> to vector<8x128xf32>
    %16 = arith.addf %14, %15 : vector<8x128xf32>
    %cst_11 = arith.constant 0.000000e+00 : f32
    %17 = vector.broadcast %cst_11 : f32 to vector<8x128xf32>
    %18 = arith.maximumf %16, %17 : vector<8x128xf32>
    %19 = arith.truncf %18 : vector<8x128xf32> to vector<8x128xbf16>
    %cst_12 = arith.constant dense<0.000000e+00> : vector<8x128xf32>
    %20 = tpu.matmul %19, %3, %cst_12 {dimension_numbers = #tpu.dot_dimension_numbers<[1], [0], [0], [1], [0, 0, 1, 1], [], []>} : vector<8x128xbf16>, vector<128x128xbf16>, vector<8x128xf32> -> vector<8x128xf32>
    %21 = vector.broadcast %6 : vector<1x128xf32> to vector<8x128xf32>
    %22 = arith.addf %20, %21 : vector<8x128xf32>
    %cst_13 = arith.constant 0.000000e+00 : f32
    %23 = vector.broadcast %cst_13 : f32 to vector<8x128xf32>
    %24 = arith.maximumf %22, %23 : vector<8x128xf32>
    %25 = vector.extract_strided_slice %0 {offsets = [0, 15], sizes = [8, 1], strides = [1, 1]} : vector<8x16xf32> to vector<8x1xf32>
    %26 = tpu.iota {dimensions = array<i32: 1>} : vector<8x128xi32>
    %27 = arith.fptosi %25 : vector<8x1xf32> to vector<8x1xi32>
    %c3_i32 = arith.constant 3 : i32
    %28 = vector.broadcast %c3_i32 : i32 to vector<8x128xi32>
    %29 = arith.cmpi slt, %26, %28 : vector<8x128xi32>
    %30 = vector.broadcast %27 : vector<8x1xi32> to vector<8x128xi32>
    %31 = arith.cmpi eq, %26, %30 : vector<8x128xi32>
    %cst_14 = arith.constant -1.000000e+30 : f32
    %32 = vector.broadcast %cst_14 : f32 to vector<8x128xf32>
    %33 = arith.select %29, %24, %32 : vector<8x128xi1>, vector<8x128xf32>
    %cst_15 = arith.constant dense<0xFF800000> : vector<8xf32>
    %34 = vector.multi_reduction <maximumf>, %33, %cst_15 [1] : vector<8x128xf32> to vector<8xf32>
    %35 = vector.shape_cast %34 : vector<8xf32> to vector<8x1xf32>
    %36 = vector.broadcast %35 : vector<8x1xf32> to vector<8x128xf32>
    %37 = arith.subf %33, %36 : vector<8x128xf32>
    %38 = math.exp %37 : vector<8x128xf32>
    %cst_16 = arith.constant dense<0.000000e+00> : vector<8xf32>
    %39 = vector.multi_reduction <add>, %38, %cst_16 [1] : vector<8x128xf32> to vector<8xf32>
    %40 = vector.shape_cast %39 : vector<8xf32> to vector<8x1xf32>
    %41 = math.log %40 : vector<8x1xf32>
    %42 = arith.addf %35, %41 : vector<8x1xf32>
    %cst_17 = arith.constant 0.000000e+00 : f32
    %43 = vector.broadcast %cst_17 : f32 to vector<8x128xf32>
    %44 = arith.select %31, %24, %43 : vector<8x128xi1>, vector<8x128xf32>
    %cst_18 = arith.constant dense<0.000000e+00> : vector<8xf32>
    %45 = vector.multi_reduction <add>, %44, %cst_18 [1] : vector<8x128xf32> to vector<8xf32>
    %46 = vector.shape_cast %45 : vector<8xf32> to vector<8x1xf32>
    %47 = arith.subf %42, %46 : vector<8x1xf32>
    %48 = vector.shape_cast %47 : vector<8x1xf32> to vector<1x8x1xf32>
    %cst_19 = arith.constant dense<0.000000e+00> : vector<1xf32>
    %49 = vector.multi_reduction <add>, %48, %cst_19 [1, 2] : vector<1x8x1xf32> to vector<1xf32>
    %50 = vector.shape_cast %49 : vector<1xf32> to vector<1x1x1xf32>
    %51 = vector.extract %50[0, 0, 0] : f32 from vector<1x1x1xf32>
    %cst_20 = arith.constant 1.250000e-01 : f32
    %52 = arith.mulf %51, %cst_20 : f32
    %c0_21 = arith.constant 0 : index
    %c0_22 = arith.constant 0 : index
    %53 = memref.load %arg3[%c0_21, %c0_22] : memref<1x1xf32, #tpu.memory_space<smem>>
    memref.store %52, %arg3[%c0_21, %c0_22] : memref<1x1xf32, #tpu.memory_space<smem>>
    return
  }
}

</mosaic_0001>

<llo_original>
// kernel: model_forward.1
$region0: #{model_forward.1}
  #allocation0 [shape = 'u32[]', space=smem, size = 0x4, offset = 0x4, fixed_abs, tag = 'smem constant byte address 0x4 - core index']
  #allocation1 [shape = 'u32[144,128]{1,0:T(1,128)}', space=vmem, size = 0x12000, scoped, tag = 'internal scratch']
  %s0 = inlined_call_operand.vmem [shape: f32[8,16], index: 0, kind: input, shape index: {}]
  %s1 = inlined_call_operand.hbm [shape: bf16[400,256], index: 1, kind: input, shape index: {}]
  %s2 = inlined_call_operand.vmem [shape: f32[1,512], index: 2, kind: input, shape index: {}]
  %s3 = inlined_call_operand.hbm [shape: f32[1,1], index: 3, kind: output, shape index: {}]
  %s4 = sld [smem:[#allocation0]]
  $region26: #{model_forward.1} parent=0
    _
  %s6 = ssub.s32 1, %s4
  %s7 = scalar_select 0, %s6, %s4
  $region1: #{model_forward.1} parent=0
    #allocation2 [shape = 'u8[204800]{0}', space=vmem, size = 0x32000, scoped, tag = 'input window, operand 1, single buffered']
    #allocation3 [shape = 's32[1]{0}', space=sflag, size = 0x4, scoped, tag = 'scoped memory for model_forward.1']
    #allocation4 [shape = 's32[1]{0}', space=sflag, size = 0x4, scoped, tag = 'scoped memory for model_forward.1']
    #allocation5 [shape = 'u8[512]{0}', space=smem, size = 0x200, scoped, tag = 'output window, operand 0, single buffered']
    %8 = vsyncpa [#allocation3], 0
    %9 = vsyncpa [#allocation4], 0
    // Predicated region
    $region2: #{model_forward.1} parent=1 // pred_check
      _
    $region3: #{model_forward.1} parent=1 // pred_check_branch
      %11 = sbr.rel (0) target = $region5
    $region4: #{model_forward.1} parent=1 // pred_region
      _
    $region5: #{model_forward.1} parent=1 // pred_fallthru
      _
    // Predicated region
    $region6: #{model_forward.1} parent=1 // pred_check
      _
    $region7: #{model_forward.1} parent=1 // pred_check_branch
      %13 = sbr.rel (0) target = $region9
    $region8: #{model_forward.1} parent=1 // pred_region
      %s15 = ssub.s32 6400, 6400
      %16 = vsyncadd [#allocation3], %s15
      %s17 = sshll.u32 [#allocation2], 4
      %s18 = int_to_ptr.vmem [resolvable:$true] %s17
      %23 = dma.hbm_to_vmem [thread:$0]  %s1, 6400, %s18, [#allocation3], 128, 128, 8
    $region9: #{model_forward.1} parent=1 // pred_fallthru
      _
    // Predicated region
    $region10: #{model_forward.1} parent=1 // pred_check
      _
    $region11: #{model_forward.1} parent=1 // pred_check_branch
      %25 = sbr.rel (0) target = $region13
    $region12: #{model_forward.1} parent=1 // pred_region
      _
    $region13: #{model_forward.1} parent=1 // pred_fallthru
      _
    // Predicated region
    $region14: #{model_forward.1} parent=1 // pred_check
      _
    $region15: #{model_forward.1} parent=1 // pred_check_branch
      %27 = sbr.rel (0) target = $region17
    $region16: #{model_forward.1} parent=1 // pred_region
      %28 = dma.done [#allocation3], 6400
    $region17: #{model_forward.1} parent=1 // pred_fallthru
      _
    %v30 = vld [vmem:[%s0] sm:$0xff]
    %v31 = vld [vmem:[#allocation2] sm:$0xff]
    %v32 = vld [vmem:[#allocation2 + $0x8] sm:$0xff]
    %v33 = vld [vmem:[#allocation2 + $0x10] sm:$0xf]
    %v34 = vld [vmem:[#allocation2 + $0x18] sm:$0xf]
    %v35 = vld [vmem:[#allocation2 + $0x20] sm:$0xf]
    %v36 = vld [vmem:[#allocation2 + $0x28] sm:$0xf]
    %v37 = vld [vmem:[#allocation2 + $0x30] sm:$0xf]
    %v38 = vld [vmem:[#allocation2 + $0x38] sm:$0xf]
    %v39 = vld [vmem:[#allocation2 + $0x40] sm:$0xf]
    %v40 = vld [vmem:[#allocation2 + $0x48] sm:$0xf]
    %v41 = vld [vmem:[#allocation2 + $0x50] sm:$0xf]
    %v42 = vld [vmem:[#allocation2 + $0x58] sm:$0xf]
    %v43 = vld [vmem:[#allocation2 + $0x60] sm:$0xf]
    %v44 = vld [vmem:[#allocation2 + $0x68] sm:$0xf]
    %v45 = vld [vmem:[#allocation2 + $0x70] sm:$0xf]
    %v46 = vld [vmem:[#allocation2 + $0x78] sm:$0xf]
    %v47 = vld [vmem:[#allocation2 + $0x80] sm:$0xf]
    %v48 = vld [vmem:[#allocation2 + $0x88] sm:$0xf]
    %v49 = vld [vmem:[#allocation2 + $0x90] sm:$0xf]
    %v50 = vld [vmem:[#allocation2 + $0x98] sm:$0xf]
    %v51 = vld [vmem:[#allocation2 + $0xa0] sm:$0xf]
    %v52 = vld [vmem:[#allocation2 + $0xa8] sm:$0xf]
    %v53 = vld [vmem:[#allocation2 + $0xb0] sm:$0xf]
    %v54 = vld [vmem:[#allocation2 + $0xb8] sm:$0xf]
    %v55 = vld [vmem:[#allocation2 + $0xc0] sm:$0xf]
    %v56 = vld [vmem:[#allocation2 + $0xc8] sm:$0xf]
    %v57 = vld [vmem:[#allocation2 + $0xd0] sm:$0xf]
    %v58 = vld [vmem:[#allocation2 + $0xd8] sm:$0xf]
    %v59 = vld [vmem:[#allocation2 + $0xe0] sm:$0xf]
    %v60 = vld [vmem:[#allocation2 + $0xe8] sm:$0xf]
    %v61 = vld [vmem:[#allocation2 + $0xf0] sm:$0xf]
    %v62 = vld [vmem:[#allocation2 + $0xf8] sm:$0xf]
    %v63 = vld [vmem:[#allocation2 + $0x100] sm:$0xf]
    %v64 = vld [vmem:[#allocation2 + $0x108] sm:$0xf]
    %v65 = vld [vmem:[#allocation2 + $0x110] sm:$0xf]
    %v66 = vld [vmem:[#allocation2 + $0x118] sm:$0xf]
    %v67 = vld [vmem:[#allocation2 + $0x120] sm:$0xf]
    %v68 = vld [vmem:[#allocation2 + $0x128] sm:$0xf]
    %v69 = vld [vmem:[#allocation2 + $0x130] sm:$0xf]
    %v70 = vld [vmem:[#allocation2 + $0x138] sm:$0xf]
    %v71 = vld [vmem:[#allocation2 + $0x140] sm:$0xf]
    %v72 = vld [vmem:[#allocation2 + $0x148] sm:$0xf]
    %v73 = vld [vmem:[#allocation2 + $0x150] sm:$0xf]
    %v74 = vld [vmem:[#allocation2 + $0x158] sm:$0xf]
    %v75 = vld [vmem:[#allocation2 + $0x160] sm:$0xf]
    %v76 = vld [vmem:[#allocation2 + $0x168] sm:$0xf]
    %v77 = vld [vmem:[#allocation2 + $0x170] sm:$0xf]
    %v78 = vld [vmem:[#allocation2 + $0x178] sm:$0xf]
    %v79 = vld [vmem:[#allocation2 + $0x180] sm:$0xf]
    %v80 = vld [vmem:[#allocation2 + $0x188] sm:$0xf]
    %v81 = vld [vmem:[%s2] sm:$0x3]
    %v82 = vld [vmem:[%s2 + $0x2] sm:$0x1]
    %v83 = vld [vmem:[%s2 + $0x3] sm:$0x1]
    %v84 = vpack.c.bf16 %v30, %v30
    %v86 = vlaneseq
    %v87 = vshrl.u32 %v86, 7
    %v88 = vsub.s32 0, %v87
    %v89 = vrot.slane %v81, %v88
    %v90 = vlaneseq
    %v91 = vshrl.u32 %v90, 7
    %v92 = vsub.s32 1, %v91
    %v93 = vrot.slane %v81, %v92
    %v98 = vunpack.c.l.b16 %v31
    %v99 = vunpack.c.h.b16 %v31
    %v100 = vunpack.c.l.b16 %v32
    %v101 = vunpack.c.h.b16 %v32
    %v102 = vpack.c.b16 %v100, %v98
    %v103 = vpack.c.b16 %v101, %v99
    %vm106 = vcmask 130048
    %v108 = vsel %vm106, %v84, 0
    %110 = vmatprep.subr.bf16.mxu0 0
    %111 = vmatpush1.bf16.msra.mxu0 0
    %112 = vmatprep.subr.bf16.mxu0 0
    %113 = vmatpush1.bf16.msra.mxu0 0
    %114 = vmatprep.subr.bf16.mxu0 0
    %115 = vmatpush1.bf16.msra.mxu0 0
    %116 = vmatprep.subr.bf16.mxu0 0
    %117 = vmatpush1.bf16.msra.mxu0 0
    %118 = vmatprep.subr.bf16.mxu0 0
    %119 = vmatpush1.bf16.msra.mxu0 0
    %120 = vmatprep.subr.bf16.mxu0 0
    %121 = vmatpush1.bf16.msra.mxu0 0
    %122 = vmatprep.subr.bf16.mxu0 0
    %123 = vmatpush1.bf16.msra.mxu0 0
    %124 = vmatprep.subr.bf16.mxu0 %v103
    %125 = vmatpush1.bf16.msra.mxu0 %v102
    %126 = vmatprep.subr.bf16.mxu0 0
    %127 = vmatpush2.bf16.msra.mxu0 0
    %128 = vmatprep.subr.bf16.mxu0 0
    %129 = vmatpush2.bf16.msra.mxu0 0
    %130 = vmatprep.subr.bf16.mxu0 0
    %131 = vmatpush2.bf16.msra.mxu0 0
    %132 = vmatprep.subr.bf16.mxu0 0
    %133 = vmatpush2.bf16.msra.mxu0 0
    %134 = vmatprep.subr.bf16.mxu0 0
    %135 = vmatpush2.bf16.msra.mxu0 0
    %136 = vmatprep.subr.bf16.mxu0 0
    %137 = vmatpush2.bf16.msra.mxu0 0
    %138 = vmatprep.subr.bf16.mxu0 0
    %139 = vmatpush2.bf16.msra.mxu0 0
    %140 = vmatprep.subr.bf16.mxu0 0
    %141 = vmatpush2.bf16.msra.mxu0 0
    %142 = vmatprep.mubr.bf16.mxu0 0
    %143 = vmatmul.mubr.bf16.gmra.mxu0 %v108
    %v144 = vpop.f32.mrf.mxu0
    %v145 = vadd.f32 %v89, %v144
    %v146 = vpop.f32.mrf.mxu0
    %v147 = vadd.f32 %v93, %v146
    %v148 = vpop.f32.mrf.mxu0
    %v149 = vpop.f32.mrf.mxu0
    %150 = vdwg.mxu0
    %v151 = vmax.f32 %v145, 0.0
    %v152 = vmax.f32 %v147, 0.0
    %v153 = vpack.c.bf16 %v151, %v151
    %v154 = vpack.c.bf16 %v152, %v152
    %v156 = vlaneseq
    %v157 = vshrl.u32 %v156, 7
    %v158 = vsub.s32 0, %v157
    %v159 = vrot.slane %v82, %v158
    %v193 = vunpack.c.l.b16 %v33
    %v194 = vunpack.c.l.b16 %v34
    %v195 = vunpack.c.l.b16 %v35
    %v196 = vunpack.c.l.b16 %v36
    %v197 = vunpack.c.l.b16 %v37
    %v198 = vunpack.c.l.b16 %v38
    %v199 = vunpack.c.l.b16 %v39
    %v200 = vunpack.c.l.b16 %v40
    %v201 = vunpack.c.l.b16 %v41
    %v202 = vunpack.c.l.b16 %v42
    %v203 = vunpack.c.l.b16 %v43
    %v204 = vunpack.c.l.b16 %v44
    %v205 = vunpack.c.l.b16 %v45
    %v206 = vunpack.c.l.b16 %v46
    %v207 = vunpack.c.l.b16 %v47
    %v208 = vunpack.c.l.b16 %v48
    %v209 = vunpack.c.l.b16 %v49
    %v210 = vunpack.c.l.b16 %v50
    %v211 = vunpack.c.l.b16 %v51
    %v212 = vunpack.c.l.b16 %v52
    %v213 = vunpack.c.l.b16 %v53
    %v214 = vunpack.c.l.b16 %v54
    %v215 = vunpack.c.l.b16 %v55
    %v216 = vunpack.c.l.b16 %v56
    %v217 = vunpack.c.l.b16 %v57
    %v218 = vunpack.c.l.b16 %v58
    %v219 = vunpack.c.l.b16 %v59
    %v220 = vunpack.c.l.b16 %v60
    %v221 = vunpack.c.l.b16 %v61
    %v222 = vunpack.c.l.b16 %v62
    %v223 = vunpack.c.l.b16 %v63
    %v224 = vunpack.c.l.b16 %v64
    %v225 = vpack.c.b16 %v194, %v193
    %v226 = vpack.c.b16 %v196, %v195
    %v227 = vpack.c.b16 %v198, %v197
    %v228 = vpack.c.b16 %v200, %v199
    %v229 = vpack.c.b16 %v202, %v201
    %v230 = vpack.c.b16 %v204, %v203
    %v231 = vpack.c.b16 %v206, %v205
    %v232 = vpack.c.b16 %v208, %v207
    %v233 = vpack.c.b16 %v210, %v209
    %v234 = vpack.c.b16 %v212, %v211
    %v235 = vpack.c.b16 %v214, %v213
    %v236 = vpack.c.b16 %v216, %v215
    %v237 = vpack.c.b16 %v218, %v217
    %v238 = vpack.c.b16 %v220, %v219
    %v239 = vpack.c.b16 %v222, %v221
    %v240 = vpack.c.b16 %v224, %v223
    %257 = vmatprep.subr.bf16.mxu0 0
    %258 = vmatpush1.bf16.msra.mxu0 %v232
    %259 = vmatprep.subr.bf16.mxu0 0
    %260 = vmatpush1.bf16.msra.mxu0 %v231
    %261 = vmatprep.subr.bf16.mxu0 0
    %262 = vmatpush1.bf16.msra.mxu0 %v230
    %263 = vmatprep.subr.bf16.mxu0 0
    %264 = vmatpush1.bf16.msra.mxu0 %v229
    %265 = vmatprep.subr.bf16.mxu0 0
    %266 = vmatpush1.bf16.msra.mxu0 %v228
    %267 = vmatprep.subr.bf16.mxu0 0
    %268 = vmatpush1.bf16.msra.mxu0 %v227
    %269 = vmatprep.subr.bf16.mxu0 0
    %270 = vmatpush1.bf16.msra.mxu0 %v226
    %271 = vmatprep.subr.bf16.mxu0 0
    %272 = vmatpush1.bf16.msra.mxu0 %v225
    %273 = vmatprep.subr.bf16.mxu0 0
    %274 = vmatpush2.bf16.msra.mxu0 %v240
    %275 = vmatprep.subr.bf16.mxu0 0
    %276 = vmatpush2.bf16.msra.mxu0 %v239
    %277 = vmatprep.subr.bf16.mxu0 0
    %278 = vmatpush2.bf16.msra.mxu0 %v238
    %279 = vmatprep.subr.bf16.mxu0 0
    %280 = vmatpush2.bf16.msra.mxu0 %v237
    %281 = vmatprep.subr.bf16.mxu0 0
    %282 = vmatpush2.bf16.msra.mxu0 %v236
    %283 = vmatprep.subr.bf16.mxu0 0
    %284 = vmatpush2.bf16.msra.mxu0 %v235
    %285 = vmatprep.subr.bf16.mxu0 0
    %286 = vmatpush2.bf16.msra.mxu0 %v234
    %287 = vmatprep.subr.bf16.mxu0 0
    %288 = vmatpush2.bf16.msra.mxu0 %v233
    %289 = vmatprep.mubr.bf16.mxu0 %v154
    %290 = vmatmul.mubr.bf16.gmra.mxu0 %v153
    %v291 = vpop.f32.mrf.mxu0
    %v292 = vadd.f32 %v159, %v291
    %v293 = vpop.f32.mrf.mxu0
    %v294 = vpop.f32.mrf.mxu0
    %v295 = vpop.f32.mrf.mxu0
    %296 = vdwg.mxu0
    %v297 = vmax.f32 %v292, 0.0
    %v298 = vpack.c.bf16 %v297, %v297
    %v300 = vlaneseq
    %v301 = vshrl.u32 %v300, 7
    %v302 = vsub.s32 0, %v301
    %v303 = vrot.slane %v83, %v302
    %v321 = vunpack.c.l.b16 %v65
    %v322 = vunpack.c.l.b16 %v66
    %v323 = vunpack.c.l.b16 %v67
    %v324 = vunpack.c.l.b16 %v68
    %v325 = vunpack.c.l.b16 %v69
    %v326 = vunpack.c.l.b16 %v70
    %v327 = vunpack.c.l.b16 %v71
    %v328 = vunpack.c.l.b16 %v72
    %v329 = vunpack.c.l.b16 %v73
    %v330 = vunpack.c.l.b16 %v74
    %v331 = vunpack.c.l.b16 %v75
    %v332 = vunpack.c.l.b16 %v76
    %v333 = vunpack.c.l.b16 %v77
    %v334 = vunpack.c.l.b16 %v78
    %v335 = vunpack.c.l.b16 %v79
    %v336 = vunpack.c.l.b16 %v80
    %v337 = vpack.c.b16 %v322, %v321
    %v338 = vpack.c.b16 %v324, %v323
    %v339 = vpack.c.b16 %v326, %v325
    %v340 = vpack.c.b16 %v328, %v327
    %v341 = vpack.c.b16 %v330, %v329
    %v342 = vpack.c.b16 %v332, %v331
    %v343 = vpack.c.b16 %v334, %v333
    %v344 = vpack.c.b16 %v336, %v335
    %353 = vmatprep.subr.bf16.mxu0 0
    %354 = vmatpush1.bf16.msra.mxu0 %v344
    %355 = vmatprep.subr.bf16.mxu0 0
    %356 = vmatpush1.bf16.msra.mxu0 %v343
    %357 = vmatprep.subr.bf16.mxu0 0
    %358 = vmatpush1.bf16.msra.mxu0 %v342
    %359 = vmatprep.subr.bf16.mxu0 0
    %360 = vmatpush1.bf16.msra.mxu0 %v341
    %361 = vmatprep.subr.bf16.mxu0 0
    %362 = vmatpush1.bf16.msra.mxu0 %v340
    %363 = vmatprep.subr.bf16.mxu0 0
    %364 = vmatpush1.bf16.msra.mxu0 %v339
    %365 = vmatprep.subr.bf16.mxu0 0
    %366 = vmatpush1.bf16.msra.mxu0 %v338
    %367 = vmatprep.subr.bf16.mxu0 0
    %368 = vmatpush1.bf16.msra.mxu0 %v337
    %369 = vmatprep.subr.bf16.mxu0 0
    %370 = vmatpush2.bf16.msra.mxu0 0
    %371 = vmatprep.subr.bf16.mxu0 0
    %372 = vmatpush2.bf16.msra.mxu0 0
    %373 = vmatprep.subr.bf16.mxu0 0
    %374 = vmatpush2.bf16.msra.mxu0 0
    %375 = vmatprep.subr.bf16.mxu0 0
    %376 = vmatpush2.bf16.msra.mxu0 0
    %377 = vmatprep.subr.bf16.mxu0 0
    %378 = vmatpush2.bf16.msra.mxu0 0
    %379 = vmatprep.subr.bf16.mxu0 0
    %380 = vmatpush2.bf16.msra.mxu0 0
    %381 = vmatprep.subr.bf16.mxu0 0
    %382 = vmatpush2.bf16.msra.mxu0 0
    %383 = vmatprep.subr.bf16.mxu0 0
    %384 = vmatpush2.bf16.msra.mxu0 0
    %385 = vmatprep.mubr.bf16.mxu0 0
    %386 = vmatmul.mubr.bf16.gmra.mxu0 %v298
    %v387 = vpop.f32.mrf.mxu0
    %v388 = vadd.f32 %v303, %v387
    %v389 = vpop.f32.mrf.mxu0
    %v390 = vpop.f32.mrf.mxu0
    %v391 = vpop.f32.mrf.mxu0
    %392 = vdwg.mxu0
    %v393 = vmax.f32 %v388, 0.0
    %v394 = vlaneseq
    %v395 = vand.u32 %v394, 127
    %v396 = vcvt.f32.s32.to.zero.pseudo %v30
    %vm397 = vcmp.lt.s32.totalorder %v395, 3
    %398 = vset.pattern.permute.xlu0 15
    %399 = vperm.xlu0 %398, %v396
    %v400 = vpop.permute.xlu0 %399
    %vm401 = vcmp.eq.s32.totalorder %v395, %v400
    %v402 = vsel %vm397, %v393, -1e+30
    %403 = vmax.xlane.f32.xlu0 %v402
    %v404 = vpop.xlane.xlu0 %403
    %v405 = vsub.f32 %v402, %v404
    %v406 = vmul.f32 %v405, 1.442695
    %v407 = vpow.pop %v406
    %408 = vadd.xlane.f32.xlu0 %v407
    %v409 = vpop.xlane.xlu0 %408
    %v410 = vlog2.pop %v409
    %v411 = vmul.f32 %v410, 0.6931472
    %v412 = vadd.f32 %v404, %v411
    %v413 = vsel %vm401, %v393, 0.0
    %414 = vadd.xlane.f32.xlu0 %v413
    %v415 = vpop.xlane.xlu0 %414
    %v416 = vsub.f32 %v412, %v415
    %vm417 = vcmask 7168
    %v418 = vsel %vm417, %v416, 0.0
    %419 = vadd.xlane.f32.xlu0 %v418
    %v420 = vpop.xlane.xlu0 %419
    %v421 = vrot.slane %v420, 4
    %v422 = vadd.f32 %v420, %v421
    %v423 = vrot.slane %v422, 2
    %v424 = vadd.f32 %v422, %v423
    %v425 = vrot.slane %v424, 1
    %v426 = vadd.f32 %v424, %v425
    %s427 = vtos %v426
    %s428 = smul.f32 %s427, 0.125
    %s429 = scalar_lea.smem [#allocation5], 0
    %430 = sst [smem:[%s429]] %s428
    // Predicated region
    $region18: #{model_forward.1} parent=1 // pred_check
      _
    $region19: #{model_forward.1} parent=1 // pred_check_branch
      %432 = sbr.rel (0) target = $region21
    $region20: #{model_forward.1} parent=1 // pred_region
      %s434 = ssub.s32 16, 16
      %435 = vsyncadd [#allocation4], %s434
      %438 = dma.smem_to_hbm [#allocation5], 16, %s3, [#allocation4]
    $region21: #{model_forward.1} parent=1 // pred_fallthru
      _
    // Predicated region
    $region22: #{model_forward.1} parent=1 // pred_check
      _
    $region23: #{model_forward.1} parent=1 // pred_check_branch
      %440 = sbr.rel (0) target = $region25
    $region24: #{model_forward.1} parent=1 // pred_region
      %441 = dma.done [#allocation4], 16
    $region25: #{model_forward.1} parent=1 // pred_fallthru
      _
    %442 = sfence
    %443 = vsyncpa [#allocation3], 1
    %444 = vsyncpa [#allocation4], 1

</llo_original>
